<compile_context>
chip_gen: v7x
topology: tpu7x:2x2x1
jax: 0.10.0
libtpu: 0.0.40
codegen_flags: <defaults>
</compile_context>

<pallas_src>
import jax
import jax.numpy as jnp
from jax.experimental import pallas as pl
from jax.experimental.pallas import tpu as pltpu


def _mlp_kernel(x_ref, w1_ref, b1_ref, w2_ref, b2_ref, o_ref):
    # FC: Linear(in_size -> mid_size) + bias, then ReLU (dropout = identity).
    h = jnp.dot(x_ref[...], w1_ref[...], preferred_element_type=jnp.float32)
    h = jnp.maximum(h + b1_ref[...], 0.0)
    # Final Linear(mid_size -> out_size) + bias.
    y = jnp.dot(h.astype(w2_ref.dtype), w2_ref[...],
                preferred_element_type=jnp.float32)
    o_ref[...] = (y + b2_ref[...]).astype(o_ref.dtype)


def _round_up(x, m):
    return (x + m - 1) // m * m


def mlp_forward(x, w1, b1, w2, b2, *, row_tile=512):
    """MLP forward.  x: [..., in_size] f32, weights in [in, out] layout.

    Returns [..., out_size] f32.
    """
    in_size, mid_size = w1.shape
    out_size = w2.shape[1]
    lead_shape = x.shape[:-1]

    xf = x.reshape(-1, in_size)
    n = xf.shape[0]

    # Row tile: large (amortizes per-step overhead, big MXU tiles) but never
    # larger than the (8-row padded) problem itself.
    rt = min(row_tile, _round_up(max(n, 1), 8))
    n_pad = _round_up(n, rt)
    if n_pad != n:
        xf = jnp.pad(xf, ((0, n_pad - n), (0, 0)))

    # bf16 inputs for the MXU; f32 accumulation inside the kernel.
    xf_b = xf.astype(jnp.bfloat16)
    w1_b = w1.astype(jnp.bfloat16)
    w2_b = w2.astype(jnp.bfloat16)
    b1_r = b1.reshape(1, mid_size).astype(jnp.float32)
    b2_r = b2.reshape(1, out_size).astype(jnp.float32)

    grid = (n_pad // rt,)

    y = pl.pallas_call(
        _mlp_kernel,
        out_shape=jax.ShapeDtypeStruct((n_pad, out_size), jnp.float32),
        grid_spec=pltpu.PrefetchScalarGridSpec(
            num_scalar_prefetch=0,
            grid=grid,
            in_specs=[
                # row tile of the (flattened) activations: pipelined over grid
                pl.BlockSpec((rt, in_size), lambda i: (i, 0)),
                # weights / biases: constant block index -> resident in VMEM
                pl.BlockSpec((in_size, mid_size), lambda i: (0, 0)),
                pl.BlockSpec((1, mid_size), lambda i: (0, 0)),
                pl.BlockSpec((mid_size, out_size), lambda i: (0, 0)),
                pl.BlockSpec((1, out_size), lambda i: (0, 0)),
            ],
            out_specs=pl.BlockSpec((rt, out_size), lambda i: (i, 0)),
        ),
        compiler_params=pltpu.CompilerParams(
            dimension_semantics=("parallel",),   # shard row tiles across TCs
            vmem_limit_bytes=64 * 1024 * 1024,   # above the scoped default
        ),
    )(xf_b, w1_b, b1_r, w2_b, b2_r)

    return y[:n].reshape(*lead_shape, out_size)


def mlp_ref(x, w1, b1, w2, b2):
    """Pure-JAX reference mirroring the PyTorch forward (inference)."""
    h = jax.nn.relu(x @ w1 + b1)
    return h @ w2 + b2


if __name__ == "__main__":
    # Small shapes consistent with the module: [batch, seq, in_size].
    B, S, IN, MID, OUT = 2, 8, 32, 64, 32

    key = jax.random.PRNGKey(0)
    kx, k1, k2, k3, k4 = jax.random.split(key, 5)
    x = jax.random.normal(kx, (B, S, IN), jnp.float32)
    w1 = jax.random.normal(k1, (IN, MID), jnp.float32) * 0.1
    b1 = jax.random.normal(k2, (MID,), jnp.float32) * 0.1
    w2 = jax.random.normal(k3, (MID, OUT), jnp.float32) * 0.1
    b2 = jax.random.normal(k4, (OUT,), jnp.float32) * 0.1

    out = mlp_forward(x, w1, b1, w2, b2)
    out = jax.block_until_ready(out)
    assert out.shape == (B, S, OUT), out.shape

    # Reference computed on bf16-rounded inputs/weights (the kernel feeds the
    # MXU in bf16 with f32 accumulation), tolerance loosened accordingly.
    bf = lambda a: a.astype(jnp.bfloat16).astype(jnp.float32)
    ref = mlp_ref(bf(x), bf(w1), b1, bf(w2), b2)
    max_err = float(jnp.max(jnp.abs(out - ref)))
    assert jnp.allclose(out, ref, atol=5e-3, rtol=5e-3), max_err

    print("KERNEL_OK")
</pallas_src>

<mosaic_0001>
module attributes {stable_mosaic.version = 11 : i64} {
  func.func @_mlp_kernel(%arg0: i32, %arg1: memref<16x32xbf16, #tpu.memory_space<vmem>>, %arg2: memref<32x64xbf16, #tpu.memory_space<vmem>>, %arg3: memref<1x64xf32, #tpu.memory_space<vmem>>, %arg4: memref<64x32xbf16, #tpu.memory_space<vmem>>, %arg5: memref<1x32xf32, #tpu.memory_space<vmem>>, %arg6: memref<16x32xf32, #tpu.memory_space<vmem>>) attributes {dimension_semantics = [#tpu.dimension_semantics<parallel>], iteration_bounds = array<i64: 1>, scalar_prefetch = 0 : i64, scratch_operands = 0 : i64, tpu.core_type = #tpu.core_type<tc>, window_params = [{transform_indices = @transform_0, window_bounds = array<i64: 16, 32>}, {pipeline_mode = #tpu.pipeline_mode<synchronous>, transform_indices = @transform_1, window_bounds = array<i64: 32, 64>}, {pipeline_mode = #tpu.pipeline_mode<synchronous>, transform_indices = @transform_2, window_bounds = array<i64: 1, 64>}, {pipeline_mode = #tpu.pipeline_mode<synchronous>, transform_indices = @transform_3, window_bounds = array<i64: 64, 32>}, {pipeline_mode = #tpu.pipeline_mode<synchronous>, transform_indices = @transform_4, window_bounds = array<i64: 1, 32>}, {transform_indices = @transform_5, window_bounds = array<i64: 16, 32>}]} {
    %c0 = arith.constant 0 : index
    %c0_0 = arith.constant 0 : index
    %0 = vector.load %arg1[%c0, %c0_0] : memref<16x32xbf16, #tpu.memory_space<vmem>>, vector<16x32xbf16>
    %c0_1 = arith.constant 0 : index
    %c0_2 = arith.constant 0 : index
    %1 = vector.load %arg2[%c0_1, %c0_2] : memref<32x64xbf16, #tpu.memory_space<vmem>>, vector<32x64xbf16>
    %cst = arith.constant dense<0.000000e+00> : vector<16x64xf32>
    %2 = tpu.matmul %0, %1, %cst {dimension_numbers = #tpu.dot_dimension_numbers<[1], [0], [0], [1], [0, 0, 1, 1], [], []>} : vector<16x32xbf16>, vector<32x64xbf16>, vector<16x64xf32> -> vector<16x64xf32>
    %c0_3 = arith.constant 0 : index
    %c0_4 = arith.constant 0 : index
    %3 = vector.load %arg3[%c0_3, %c0_4] : memref<1x64xf32, #tpu.memory_space<vmem>>, vector<1x64xf32>
    %4 = vector.broadcast %3 : vector<1x64xf32> to vector<16x64xf32>
    %5 = arith.addf %2, %4 : vector<16x64xf32>
    %cst_5 = arith.constant 0.000000e+00 : f32
    %6 = vector.broadcast %cst_5 : f32 to vector<16x64xf32>
    %7 = arith.maximumf %5, %6 : vector<16x64xf32>
    %8 = arith.truncf %7 : vector<16x64xf32> to vector<16x64xbf16>
    %c0_6 = arith.constant 0 : index
    %c0_7 = arith.constant 0 : index
    %9 = vector.load %arg4[%c0_6, %c0_7] : memref<64x32xbf16, #tpu.memory_space<vmem>>, vector<64x32xbf16>
    %cst_8 = arith.constant dense<0.000000e+00> : vector<16x32xf32>
    %10 = tpu.matmul %8, %9, %cst_8 {dimension_numbers = #tpu.dot_dimension_numbers<[1], [0], [0], [1], [0, 0, 1, 1], [], []>} : vector<16x64xbf16>, vector<64x32xbf16>, vector<16x32xf32> -> vector<16x32xf32>
    %c0_9 = arith.constant 0 : index
    %c0_10 = arith.constant 0 : index
    %11 = vector.load %arg5[%c0_9, %c0_10] : memref<1x32xf32, #tpu.memory_space<vmem>>, vector<1x32xf32>
    %12 = vector.broadcast %11 : vector<1x32xf32> to vector<16x32xf32>
    %13 = arith.addf %10, %12 : vector<16x32xf32>
    %c0_11 = arith.constant 0 : index
    %c0_12 = arith.constant 0 : index
    %14 = vector.load %arg6[%c0_11, %c0_12] : memref<16x32xf32, #tpu.memory_space<vmem>>, vector<16x32xf32>
    tpu.vector_store %arg6[%c0_11, %c0_12], %13 {strides = array<i32>} : memref<16x32xf32, #tpu.memory_space<vmem>>, vector<16x32xf32>,
    return
  }
  func.func @transform_0(%arg0: i32) -> (i32, i32) {
    %c0_i32 = arith.constant 0 : i32
    %c0_i32_0 = arith.constant 0 : i32
    return %arg0, %c0_i32 : i32, i32
  }
  func.func @transform_1(%arg0: i32) -> (i32, i32) {
    %c0_i32 = arith.constant 0 : i32
    %c0_i32_0 = arith.constant 0 : i32
    %c0_i32_1 = arith.constant 0 : i32
    return %c0_i32, %c0_i32_0 : i32, i32
  }
  func.func @transform_2(%arg0: i32) -> (i32, i32) {
    %c0_i32 = arith.constant 0 : i32
    %c0_i32_0 = arith.constant 0 : i32
    %c0_i32_1 = arith.constant 0 : i32
    return %c0_i32, %c0_i32_0 : i32, i32
  }
  func.func @transform_3(%arg0: i32) -> (i32, i32) {
    %c0_i32 = arith.constant 0 : i32
    %c0_i32_0 = arith.constant 0 : i32
    %c0_i32_1 = arith.constant 0 : i32
    return %c0_i32, %c0_i32_0 : i32, i32
  }
  func.func @transform_4(%arg0: i32) -> (i32, i32) {
    %c0_i32 = arith.constant 0 : i32
    %c0_i32_0 = arith.constant 0 : i32
    %c0_i32_1 = arith.constant 0 : i32
    return %c0_i32, %c0_i32_0 : i32, i32
  }
  func.func @transform_5(%arg0: i32) -> (i32, i32) {
    %c0_i32 = arith.constant 0 : i32
    %c0_i32_0 = arith.constant 0 : i32
    return %arg0, %c0_i32 : i32, i32
  }
}

</mosaic_0001>

<llo_original>
// kernel: tpu_custom_call.1
$region0: #{tpu_custom_call.1}
  #allocation0 [shape = 'u32[]', space=smem, size = 0x4, offset = 0x4, fixed_abs, tag = 'smem constant byte address 0x4 - core index']
  #allocation1 [shape = 'u32[144,128]{1,0:T(1,128)}', space=vmem, size = 0x12000, scoped, tag = 'internal scratch']
  %s0 = inlined_call_operand.hbm [shape: bf16[16,32], index: 0, kind: input, shape index: {}]
  %s1 = inlined_call_operand.hbm [shape: bf16[32,64], index: 1, kind: input, shape index: {}]
  %s2 = inlined_call_operand.hbm [shape: f32[1,64], index: 2, kind: input, shape index: {}]
  %s3 = inlined_call_operand.hbm [shape: bf16[64,32], index: 3, kind: input, shape index: {}]
  %s4 = inlined_call_operand.hbm [shape: f32[1,32], index: 4, kind: input, shape index: {}]
  %s5 = inlined_call_operand.hbm [shape: f32[16,32], index: 5, kind: output, shape index: {}]
  %s6 = sld [smem:[#allocation0]]
  $region50: #{tpu_custom_call.1} parent=0
    _
  %s8 = ssub.s32 1, %s6
  %s9 = scalar_select 0, %s8, %s6
  $region1: #{tpu_custom_call.1} parent=0
    #allocation2 [shape = 'u8[4096]{0}', space=vmem, size = 0x1000, scoped, tag = 'input window, operand 0, single buffered']
    #allocation3 [shape = 's32[1]{0}', space=sflag, size = 0x4, scoped, tag = 'scoped memory for tpu_custom_call.1']
    #allocation4 [shape = 's32[1]{0}', space=sflag, size = 0x4, scoped, tag = 'scoped memory for tpu_custom_call.1']
    #allocation5 [shape = 'u8[8192]{0}', space=vmem, size = 0x2000, scoped, tag = 'input window, operand 1, single buffered']
    #allocation6 [shape = 's32[1]{0}', space=sflag, size = 0x4, scoped, tag = 'scoped memory for tpu_custom_call.1']
    #allocation7 [shape = 'u8[512]{0}', space=vmem, size = 0x400, scoped, tag = 'input window, operand 2, single buffered']
    #allocation8 [shape = 'u8[16384]{0}', space=vmem, size = 0x4000, scoped, tag = 'input window, operand 3, single buffered']
    #allocation9 [shape = 's32[1]{0}', space=sflag, size = 0x4, scoped, tag = 'scoped memory for tpu_custom_call.1']
    #allocation10 [shape = 'u8[512]{0}', space=vmem, size = 0x400, scoped, tag = 'input window, operand 4, single buffered']
    #allocation11 [shape = 'u8[8192]{0}', space=vmem, size = 0x2000, scoped, tag = 'output window, operand 0, single buffered']
    %10 = vsyncpa [#allocation3], 0
    %11 = vsyncpa [#allocation6], 0
    %12 = vsyncpa [#allocation9], 0
    %13 = vsyncpa [#allocation4], 0
    // Predicated region
    $region2: #{tpu_custom_call.1} parent=1 // pred_check
      _
    $region3: #{tpu_custom_call.1} parent=1 // pred_check_branch
      %15 = sbr.rel (0) target = $region5
    $region4: #{tpu_custom_call.1} parent=1 // pred_region
      %s17 = ssub.s32 128, 128
      %18 = vsyncadd [#allocation3], %s17
      %s19 = sshll.u32 [#allocation2], 4
      %s20 = int_to_ptr.vmem [resolvable:$true] %s19
      %25 = dma.hbm_to_vmem [thread:$0]  %s0, 128, %s20, [#allocation3], 64, 64, 4
    $region5: #{tpu_custom_call.1} parent=1 // pred_fallthru
      _
    // Predicated region
    $region6: #{tpu_custom_call.1} parent=1 // pred_check
      _
    $region7: #{tpu_custom_call.1} parent=1 // pred_check_branch
      %27 = sbr.rel (0) target = $region9
    $region8: #{tpu_custom_call.1} parent=1 // pred_region
      %s29 = ssub.s32 256, 256
      %30 = vsyncadd [#allocation6], %s29
      %s31 = sshll.u32 [#allocation5], 4
      %s32 = int_to_ptr.vmem [resolvable:$true] %s31
      %37 = dma.hbm_to_vmem [thread:$0]  %s1, 256, %s32, [#allocation6], 64, 64, 4
    $region9: #{tpu_custom_call.1} parent=1 // pred_fallthru
      _
    // Predicated region
    $region10: #{tpu_custom_call.1} parent=1 // pred_check
      _
    $region11: #{tpu_custom_call.1} parent=1 // pred_check_branch
      %39 = sbr.rel (0) target = $region13
    $region12: #{tpu_custom_call.1} parent=1 // pred_region
      %s41 = ssub.s32 16, 16
      %42 = vsyncadd [#allocation6], %s41
      %s44 = sshll.u32 [#allocation7], 4
      %s45 = int_to_ptr.vmem [resolvable:$true] %s44
      %47 = dma.hbm_to_vmem [thread:$0]  %s2, 16, %s45, [#allocation6]
    $region13: #{tpu_custom_call.1} parent=1 // pred_fallthru
      _
    // Predicated region
    $region14: #{tpu_custom_call.1} parent=1 // pred_check
      _
    $region15: #{tpu_custom_call.1} parent=1 // pred_check_branch
      %49 = sbr.rel (0) target = $region17
    $region16: #{tpu_custom_call.1} parent=1 // pred_region
      %s51 = ssub.s32 512, 512
      %52 = vsyncadd [#allocation9], %s51
      %s53 = sshll.u32 [#allocation8], 4
      %s54 = int_to_ptr.vmem [resolvable:$true] %s53
      %59 = dma.hbm_to_vmem [thread:$0]  %s3, 512, %s54, [#allocation9], 64, 64, 4
    $region17: #{tpu_custom_call.1} parent=1 // pred_fallthru
      _
    // Predicated region
    $region18: #{tpu_custom_call.1} parent=1 // pred_check
      _
    $region19: #{tpu_custom_call.1} parent=1 // pred_check_branch
      %61 = sbr.rel (0) target = $region21
    $region20: #{tpu_custom_call.1} parent=1 // pred_region
      %s63 = ssub.s32 16, 16
      %64 = vsyncadd [#allocation9], %s63
      %s66 = sshll.u32 [#allocation10], 4
      %s67 = int_to_ptr.vmem [resolvable:$true] %s66
      %69 = dma.hbm_to_vmem [thread:$0]  %s4, 16, %s67, [#allocation9]
    $region21: #{tpu_custom_call.1} parent=1 // pred_fallthru
      _
    // Predicated region
    $region22: #{tpu_custom_call.1} parent=1 // pred_check
      _
    $region23: #{tpu_custom_call.1} parent=1 // pred_check_branch
      %71 = sbr.rel (0) target = $region25
    $region24: #{tpu_custom_call.1} parent=1 // pred_region
      %72 = dma.done [#allocation3], 128
    $region25: #{tpu_custom_call.1} parent=1 // pred_fallthru
      _
    // Predicated region
    $region26: #{tpu_custom_call.1} parent=1 // pred_check
      _
    $region27: #{tpu_custom_call.1} parent=1 // pred_check_branch
      %74 = sbr.rel (0) target = $region29
    $region28: #{tpu_custom_call.1} parent=1 // pred_region
      %75 = dma.done [#allocation6], 256
    $region29: #{tpu_custom_call.1} parent=1 // pred_fallthru
      _
    // Predicated region
    $region30: #{tpu_custom_call.1} parent=1 // pred_check
      _
    $region31: #{tpu_custom_call.1} parent=1 // pred_check_branch
      %77 = sbr.rel (0) target = $region33
    $region32: #{tpu_custom_call.1} parent=1 // pred_region
      %78 = dma.done [#allocation6], 16
    $region33: #{tpu_custom_call.1} parent=1 // pred_fallthru
      _
    // Predicated region
    $region34: #{tpu_custom_call.1} parent=1 // pred_check
      _
    $region35: #{tpu_custom_call.1} parent=1 // pred_check_branch
      %80 = sbr.rel (0) target = $region37
    $region36: #{tpu_custom_call.1} parent=1 // pred_region
      %81 = dma.done [#allocation9], 512
    $region37: #{tpu_custom_call.1} parent=1 // pred_fallthru
      _
    // Predicated region
    $region38: #{tpu_custom_call.1} parent=1 // pred_check
      _
    $region39: #{tpu_custom_call.1} parent=1 // pred_check_branch
      %83 = sbr.rel (0) target = $region41
    $region40: #{tpu_custom_call.1} parent=1 // pred_region
      %84 = dma.done [#allocation9], 16
    $region41: #{tpu_custom_call.1} parent=1 // pred_fallthru
      _
    %v86 = vld [vmem:[#allocation2] sm:$0xf]
    %v87 = vld [vmem:[#allocation2 + $0x4] sm:$0xf]
    %v88 = vld [vmem:[#allocation5] sm:$0xf]
    %v89 = vld [vmem:[#allocation5 + $0x4] sm:$0xf]
    %v90 = vld [vmem:[#allocation5 + $0x8] sm:$0xf]
    %v91 = vld [vmem:[#allocation5 + $0xc] sm:$0xf]
    %v92 = vld [vmem:[#allocation7] sm:$0x1]
    %v94 = vlaneseq
    %v95 = vshrl.u32 %v94, 7
    %v96 = vsub.s32 0, %v95
    %v97 = vrot.slane %v92, %v96
    %v101 = vunpack.c.l.b16 %v86
    %v102 = vunpack.c.l.b16 %v87
    %v103 = vpack.c.b16 %v102, %v101
    %v108 = vunpack.c.l.b16 %v88
    %v109 = vunpack.c.l.b16 %v89
    %v110 = vunpack.c.l.b16 %v90
    %v111 = vunpack.c.l.b16 %v91
    %v112 = vpack.c.b16 %v109, %v108
    %v113 = vpack.c.b16 %v111, %v110
    %vm116 = vcmask 261120
    %v118 = vsel %vm116, %v103, 0
    %120 = vmatprep.subr.bf16.mxu0 0
    %121 = vmatpush1.bf16.msra.mxu0 %v112
    %122 = vmatprep.subr.bf16.mxu0 0
    %123 = vmatpush1.bf16.msra.mxu0 %v113
    %124 = vmatprep.subr.bf16.mxu0 0
    %125 = vmatpush1.bf16.msra.mxu0 0
    %126 = vmatprep.subr.bf16.mxu0 0
    %127 = vmatpush1.bf16.msra.mxu0 0
    %128 = vmatprep.subr.bf16.mxu0 0
    %129 = vmatpush1.bf16.msra.mxu0 0
    %130 = vmatprep.subr.bf16.mxu0 0
    %131 = vmatpush1.bf16.msra.mxu0 0
    %132 = vmatprep.subr.bf16.mxu0 0
    %133 = vmatpush1.bf16.msra.mxu0 0
    %134 = vmatprep.subr.bf16.mxu0 0
    %135 = vmatpush1.bf16.msra.mxu0 0
    %136 = vmatprep.subr.bf16.mxu0 0
    %137 = vmatpush1.bf16.msra.mxu0 0
    %138 = vmatprep.subr.bf16.mxu0 0
    %139 = vmatpush1.bf16.msra.mxu0 0
    %140 = vmatprep.subr.bf16.mxu0 0
    %141 = vmatpush1.bf16.msra.mxu0 0
    %142 = vmatprep.subr.bf16.mxu0 0
    %143 = vmatpush1.bf16.msra.mxu0 0
    %144 = vmatprep.subr.bf16.mxu0 0
    %145 = vmatpush1.bf16.msra.mxu0 0
    %146 = vmatprep.subr.bf16.mxu0 0
    %147 = vmatpush1.bf16.msra.mxu0 0
    %148 = vmatprep.subr.bf16.mxu0 0
    %149 = vmatpush1.bf16.msra.mxu0 0
    %150 = vmatprep.subr.bf16.mxu0 0
    %151 = vmatpush1.bf16.msra.mxu0 0
    %152 = vmatprep.mubr.bf16.mxu0 0
    %153 = vmatmul.mubr.bf16.gmra.mrb[0].mxu0 %v118
    %v154 = vpop.f32.mrb[0].mxu0
    %v155 = vadd.f32 %v97, %v154
    %v156 = vpop.f32.mrb[0].mxu0
    %v157 = vpop.f32.mrb[0].mxu0
    %v158 = vadd.f32 %v97, %v157
    %v159 = vpop.f32.mrb[0].mxu0
    %160 = vdwg.mxu0
    %v161 = vmax.f32 %v155, 0.0
    %v162 = vmax.f32 %v158, 0.0
    %v163 = vpack.c.bf16 %v162, %v161
    %v164 = vld [vmem:[#allocation8] sm:$0xf]
    %v165 = vld [vmem:[#allocation8 + $0x4] sm:$0xf]
    %v166 = vld [vmem:[#allocation8 + $0x8] sm:$0xf]
    %v167 = vld [vmem:[#allocation8 + $0xc] sm:$0xf]
    %v168 = vld [vmem:[#allocation8 + $0x10] sm:$0xf]
    %v169 = vld [vmem:[#allocation8 + $0x14] sm:$0xf]
    %v170 = vld [vmem:[#allocation8 + $0x18] sm:$0xf]
    %v171 = vld [vmem:[#allocation8 + $0x1c] sm:$0xf]
    %v172 = vld [vmem:[#allocation10] sm:$0x1]
    %v174 = vlaneseq
    %v175 = vshrl.u32 %v174, 7
    %v176 = vsub.s32 0, %v175
    %v177 = vrot.slane %v172, %v176
    %v187 = vunpack.c.l.b16 %v164
    %v188 = vunpack.c.l.b16 %v165
    %v189 = vunpack.c.l.b16 %v166
    %v190 = vunpack.c.l.b16 %v167
    %v191 = vunpack.c.l.b16 %v168
    %v192 = vunpack.c.l.b16 %v169
    %v193 = vunpack.c.l.b16 %v170
    %v194 = vunpack.c.l.b16 %v171
    %v195 = vpack.c.b16 %v188, %v187
    %v196 = vpack.c.b16 %v190, %v189
    %v197 = vpack.c.b16 %v192, %v191
    %v198 = vpack.c.b16 %v194, %v193
    %vm203 = vcmask 523264
    %v205 = vsel %vm203, %v163, 0
    %207 = vmatprep.subr.bf16.mxu0 0
    %208 = vmatpush1.bf16.msra.mxu0 %v195
    %209 = vmatprep.subr.bf16.mxu0 0
    %210 = vmatpush1.bf16.msra.mxu0 %v196
    %211 = vmatprep.subr.bf16.mxu0 0
    %212 = vmatpush1.bf16.msra.mxu0 %v197
    %213 = vmatprep.subr.bf16.mxu0 0
    %214 = vmatpush1.bf16.msra.mxu0 %v198
    %215 = vmatprep.subr.bf16.mxu0 0
    %216 = vmatpush1.bf16.msra.mxu0 0
    %217 = vmatprep.subr.bf16.mxu0 0
    %218 = vmatpush1.bf16.msra.mxu0 0
    %219 = vmatprep.subr.bf16.mxu0 0
    %220 = vmatpush1.bf16.msra.mxu0 0
    %221 = vmatprep.subr.bf16.mxu0 0
    %222 = vmatpush1.bf16.msra.mxu0 0
    %223 = vmatprep.subr.bf16.mxu0 0
    %224 = vmatpush1.bf16.msra.mxu0 0
    %225 = vmatprep.subr.bf16.mxu0 0
    %226 = vmatpush1.bf16.msra.mxu0 0
    %227 = vmatprep.subr.bf16.mxu0 0
    %228 = vmatpush1.bf16.msra.mxu0 0
    %229 = vmatprep.subr.bf16.mxu0 0
    %230 = vmatpush1.bf16.msra.mxu0 0
    %231 = vmatprep.subr.bf16.mxu0 0
    %232 = vmatpush1.bf16.msra.mxu0 0
    %233 = vmatprep.subr.bf16.mxu0 0
    %234 = vmatpush1.bf16.msra.mxu0 0
    %235 = vmatprep.subr.bf16.mxu0 0
    %236 = vmatpush1.bf16.msra.mxu0 0
    %237 = vmatprep.subr.bf16.mxu0 0
    %238 = vmatpush1.bf16.msra.mxu0 0
    %239 = vmatprep.mubr.bf16.mxu0 0
    %240 = vmatmul.mubr.bf16.gmra.mrb[0].mxu0 %v205
    %v241 = vpop.f32.mrb[0].mxu0
    %v242 = vadd.f32 %v177, %v241
    %v243 = vpop.f32.mrb[0].mxu0
    %v244 = vpop.f32.mrb[0].mxu0
    %v245 = vadd.f32 %v177, %v244
    %v246 = vpop.f32.mrb[0].mxu0
    %247 = vdwg.mxu0
    %248 = vst.msk [vmem:[#allocation11] sm:$0xff] %vm116, %v242
    %249 = vst.msk [vmem:[#allocation11 + $0x8] sm:$0xff] %vm116, %v245
    // Predicated region
    $region42: #{tpu_custom_call.1} parent=1 // pred_check
      _
    $region43: #{tpu_custom_call.1} parent=1 // pred_check_branch
      %251 = sbr.rel (0) target = $region45
    $region44: #{tpu_custom_call.1} parent=1 // pred_region
      %s253 = ssub.s32 256, 256
      %254 = vsyncadd [#allocation4], %s253
      %s255 = sshll.u32 [#allocation11], 4
      %s256 = int_to_ptr.vmem [resolvable:$true] %s255
      %261 = dma.vmem_to_hbm [thread:$0]  %s256, 256, %s5, [#allocation4], 128, 128, 8
    $region45: #{tpu_custom_call.1} parent=1 // pred_fallthru
      _
    // Predicated region
    $region46: #{tpu_custom_call.1} parent=1 // pred_check
      _
    $region47: #{tpu_custom_call.1} parent=1 // pred_check_branch
      %263 = sbr.rel (0) target = $region49
    $region48: #{tpu_custom_call.1} parent=1 // pred_region
      %264 = dma.done [#allocation4], 256
    $region49: #{tpu_custom_call.1} parent=1 // pred_fallthru
      _
    %265 = vsyncpa [#allocation3], 1
    %266 = vsyncpa [#allocation6], 1
    %267 = vsyncpa [#allocation9], 1
    %268 = vsyncpa [#allocation4], 1

</llo_original>
